<compile_context>
chip_gen: v5e
topology: v5e:2x2
jax: 0.10.0
libtpu: 0.0.40
codegen_flags: <defaults>
</compile_context>

<pallas_src>
import math

import jax
import jax.numpy as jnp
from jax.experimental import pallas as pl
from jax.experimental.pallas import tpu as pltpu


_VMEM_LIMIT = 48 * 1024 * 1024  # headroom under v7x's 64 MiB physical VMEM


def _token_tiling(M):
    """Token-dim tile (<=512) with >=2 grid steps (megacore); pad M if awkward."""
    for t in (512, 256, 128, 64, 32, 16, 8):
        if M % t == 0 and M // t >= 2:
            return t, M
    if M <= 8:
        return M, M
    t = min(512, ((M + 1) // 2 + 7) // 8 * 8)
    return t, ((M + t - 1) // t) * t


# ---------------------------------------------------------------------------
# Kernel 1: fused "stem" — 1x1 conv (+folded BN) + SiLU, then p + Linear(p)
# ---------------------------------------------------------------------------
def _stem_conv_kernel(x_ref, wc_ref, bc_ref, wl_ref, bl_ref, o_ref):
    # conv weight already has the BN scale folded in; bc is the folded BN bias.
    t = jnp.dot(x_ref[...].astype(jnp.bfloat16), wc_ref[...],
                preferred_element_type=jnp.float32) + bc_ref[...]
    t = t * jax.nn.sigmoid(t)                                    # SiLU (f32)
    o_ref[...] = t + jnp.dot(t.astype(jnp.bfloat16), wl_ref[...],
                             preferred_element_type=jnp.float32) + bl_ref[...]


def _stem_noconv_kernel(x_ref, wl_ref, bl_ref, o_ref):
    t = x_ref[...]
    o_ref[...] = t + jnp.dot(t.astype(jnp.bfloat16), wl_ref[...],
                             preferred_element_type=jnp.float32) + bl_ref[...]


def stem(tokens, params, has_conv):
    M = tokens.shape[0]
    c2 = params["lin_w"].shape[1]
    tm, Mp = _token_tiling(M)
    if Mp != M:
        tokens = jnp.pad(tokens, ((0, Mp - M), (0, 0)))

    def const(shp):
        return pl.BlockSpec(shp, lambda i: (0, 0))

    if has_conv:
        c1 = params["conv_w"].shape[0]
        kernel = _stem_conv_kernel
        in_specs = [pl.BlockSpec((tm, c1), lambda i: (i, 0)),
                    const((c1, c2)), const((1, c2)),
                    const((c2, c2)), const((1, c2))]
        args = (tokens, params["conv_w"], params["bn_bias"],
                params["lin_w"], params["lin_b"])
    else:
        kernel = _stem_noconv_kernel
        in_specs = [pl.BlockSpec((tm, c2), lambda i: (i, 0)),
                    const((c2, c2)), const((1, c2))]
        args = (tokens, params["lin_w"], params["lin_b"])

    out = pl.pallas_call(
        kernel,
        grid=(Mp // tm,),
        in_specs=in_specs,
        out_specs=pl.BlockSpec((tm, c2), lambda i: (i, 0)),
        out_shape=jax.ShapeDtypeStruct((Mp, c2), jnp.float32),
        compiler_params=pltpu.CompilerParams(
            dimension_semantics=("parallel",),
            vmem_limit_bytes=_VMEM_LIMIT),
    )(*args)
    return out[:M] if Mp != M else out


# ---------------------------------------------------------------------------
# Kernel 2: ONE fused TransformerLayer — per (batch, head) grid step:
#   per-head q/k/v projection (in-VMEM) -> scores -> softmax (deferred norm)
#   -> P@V -> out-projection accumulated into an (S, c) f32 scratch; on the
#   last head: + residual (pre-added) and the folded fc + residual.
# ---------------------------------------------------------------------------
def _layer_kernel(x_ref, wqkv_ref, bqkv_ref, wo_ref, bo_ref, wfc_ref,
                  o_ref, acc_ref):
    h = pl.program_id(1)

    @pl.when(h == 0)
    def _():
        # residual + out_proj bias, added once per batch element.
        acc_ref[...] = x_ref[...] + bo_ref[...]

    xb = x_ref[...].astype(jnp.bfloat16)                        # (S, c)

    # Per-head q/k/v projections (outer linears + 1/sqrt(hd) pre-folded).
    q = jnp.dot(xb, wqkv_ref[0], preferred_element_type=jnp.float32) + bqkv_ref[0]
    k = jnp.dot(xb, wqkv_ref[1], preferred_element_type=jnp.float32) + bqkv_ref[1]
    v = jnp.dot(xb, wqkv_ref[2], preferred_element_type=jnp.float32) + bqkv_ref[2]

    # Scores + softmax with deferred normalization (scale the (S, hd) output
    # by 1/rowsum instead of the (S, S) probability matrix).
    s = jnp.einsum('qd,kd->qk', q.astype(jnp.bfloat16), k.astype(jnp.bfloat16),
                   preferred_element_type=jnp.float32)           # (S, S) f32
    s = s - jnp.max(s, axis=-1, keepdims=True)
    p = jnp.exp(s)
    rsum = jnp.sum(p, axis=-1, keepdims=True)                    # (S, 1)
    o = jnp.dot(p.astype(jnp.bfloat16), v.astype(jnp.bfloat16),
                preferred_element_type=jnp.float32)              # (S, hd)
    o = o * pl.reciprocal(rsum, approx=True)

    # Out-projection for this head, accumulated into the (S, c) f32 scratch
    # (no (H, S, c) intermediate, no cross-head reduction at the end).
    acc_ref[...] += jnp.dot(o.astype(jnp.bfloat16), wo_ref[...],
                            preferred_element_type=jnp.float32)

    @pl.when(h == pl.num_programs(1) - 1)
    def _():
        x1 = acc_ref[...]
        # fc2(fc1(x)) with the two bias-free weights pre-folded + residual.
        o_ref[...] = x1 + jnp.dot(x1.astype(jnp.bfloat16), wfc_ref[...],
                                  preferred_element_type=jnp.float32)


def attn_layer(x_bsc, layer, num_heads):
    b, S, c = x_bsc.shape
    H = num_heads
    hd = c // H
    # TODO(synk): flash-style q-row/KV-block tiling (extra grid axes + online
    # max/sum scratch) for very large S; per-head (S, S) scores are fine here.
    return pl.pallas_call(
        _layer_kernel,
        grid=(b, H),
        in_specs=[
            pl.BlockSpec((None, S, c), lambda i, h: (i, 0, 0)),      # x
            pl.BlockSpec((None, 3, c, hd), lambda i, h: (h, 0, 0, 0)),  # w_qkv
            pl.BlockSpec((None, 3, 1, hd), lambda i, h: (h, 0, 0, 0)),  # b_qkv
            pl.BlockSpec((None, hd, c), lambda i, h: (h, 0, 0)),     # wo per head
            pl.BlockSpec((1, c), lambda i, h: (0, 0)),               # bo
            pl.BlockSpec((c, c), lambda i, h: (0, 0)),               # w_fc
        ],
        out_specs=pl.BlockSpec((None, S, c), lambda i, h: (i, 0, 0)),
        out_shape=jax.ShapeDtypeStruct((b, S, c), jnp.float32),
        scratch_shapes=[pltpu.VMEM((S, c), jnp.float32)],
        compiler_params=pltpu.CompilerParams(
            dimension_semantics=("parallel", "arbitrary"),
            vmem_limit_bytes=_VMEM_LIMIT),
    )(x_bsc, layer["w_qkv"], layer["b_qkv"], layer["wo_h"], layer["bo"],
      layer["w_fc"])


# ---------------------------------------------------------------------------
# Parameter init (deterministic) + exact algebraic folding into kernel weights.
# Weights are stored (in, out) so kernels compute x @ W; matmul weights in bf16.
# ---------------------------------------------------------------------------
def init_params(key, c1, c2, num_layers, num_heads):
    keys = iter(jax.random.split(key, 16 + 16 * num_layers))

    def rnd(shape, scale=0.1):
        return jax.random.normal(next(keys), shape, jnp.float32) * scale

    hd = c2 // num_heads
    scaling = 1.0 / math.sqrt(hd)
    params = {}

    if c1 != c2:
        conv_w = rnd((c1, c2))                       # 1x1 conv as (c1, c2)
        gamma = 1.0 + 0.1 * jax.random.normal(next(keys), (c2,), jnp.float32)
        beta = 0.1 * jax.random.normal(next(keys), (c2,), jnp.float32)
        mean = 0.1 * jax.random.normal(next(keys), (c2,), jnp.float32)
        var = jnp.abs(1.0 + 0.1 * jax.random.normal(next(keys), (c2,), jnp.float32))
        bn_scale = gamma / jnp.sqrt(var + 1e-5)
        # Fold eval-mode BN scale into conv weight; bias kept separate (f32).
        params["conv_w"] = (conv_w * bn_scale[None, :]).astype(jnp.bfloat16)
        params["bn_bias"] = (beta - mean * bn_scale).reshape(1, c2)
        # TODO(synk): training-mode BatchNorm (batch statistics) not implemented;
        # eval-mode running stats are folded above.

    # self.linear = nn.Linear(c2, c2)
    params["lin_w"] = rnd((c2, c2)).astype(jnp.bfloat16)
    params["lin_b"] = rnd((1, c2))

    def per_head(w):                      # (c2, c2) -> (H, c2, hd)
        return w.reshape(c2, num_heads, hd).transpose(1, 0, 2)

    def per_head_b(bvec):                 # (1, c2) -> (H, 1, hd)
        return bvec.reshape(num_heads, hd)[:, None, :]

    layers = []
    for _ in range(num_layers):
        wq, wk, wv = rnd((c2, c2)), rnd((c2, c2)), rnd((c2, c2))
        wiq, wik, wiv = rnd((c2, c2)), rnd((c2, c2)), rnd((c2, c2))
        biq, bik, biv = rnd((1, c2)), rnd((1, c2)), rnd((1, c2))
        wo, bo = rnd((c2, c2)), rnd((1, c2))
        w1, w2 = rnd((c2, c2)), rnd((c2, c2))

        # Fold outer q/k/v linears into the MHA in_proj; fold the 1/sqrt(hd)
        # query scaling into the folded q weight/bias; split per head so the
        # in-kernel projection produces (S, hd) head blocks directly (the
        # (b*S, 3c) qkv tensor and its HBM round-trip never exist).
        wq_h = per_head((wq @ wiq) * scaling)
        wk_h = per_head(wk @ wik)
        wv_h = per_head(wv @ wiv)
        layers.append({
            "w_qkv": jnp.stack([wq_h, wk_h, wv_h],
                               axis=1).astype(jnp.bfloat16),        # (H,3,c,hd)
            "b_qkv": jnp.stack([per_head_b(biq * scaling), per_head_b(bik),
                                per_head_b(biv)], axis=1),          # (H,3,1,hd)
            "wo_h": wo.reshape(num_heads, hd, c2).astype(jnp.bfloat16),  # (H,hd,c)
            "bo": bo,                                               # (1, c) f32
            "w_fc": (w1 @ w2).astype(jnp.bfloat16),                 # fc1 @ fc2
        })
    params["layers"] = layers
    return params


# ---------------------------------------------------------------------------
# Full TransformerBlock forward
# ---------------------------------------------------------------------------
def transformer_block(x, params, c2, num_heads):
    b, c1, w, h = x.shape
    S = w * h
    # NCHW -> (b*S, c1); S flattened row-major over (w, h) (matches flatten(2)).
    tokens = jnp.transpose(x, (0, 2, 3, 1)).reshape(b * S, c1)

    # Conv+BN+SiLU (if c1 != c2) fused with x = p + linear(p).
    tokens = stem(tokens, params, has_conv=(c1 != c2))             # (b*S, c2)

    # TODO(synk): stem + all layers could be fused into one kernel with
    # resident weights / input_output_aliases at these small model sizes.
    x_bsc = tokens.reshape(b, S, c2)
    for layer in params["layers"]:
        # One fused kernel per layer (qkv proj + attention + out-proj + fc).
        x_bsc = attn_layer(x_bsc, layer, num_heads)

    # (b, S, c2) -> NCHW (b, c2, w, h)
    return jnp.transpose(x_bsc, (0, 2, 1)).reshape(b, c2, w, h)


if __name__ == "__main__":
    b, c1, w, h = 2, 4, 16, 16
    c2, num_heads, num_layers = 32, 4, 2

    key = jax.random.PRNGKey(0)
    k_x, k_p = jax.random.split(key)
    x = jax.random.normal(k_x, (b, c1, w, h), jnp.float32)
    params = init_params(k_p, c1, c2, num_layers, num_heads)

    out = transformer_block(x, params, c2, num_heads)
    out = jax.block_until_ready(out)
    assert out.shape == (b, c2, w, h), out.shape
    print("KERNEL_OK")
</pallas_src>

<mosaic_0001>
module attributes {stable_mosaic.version = 11 : i64} {
  func.func @_stem_conv_kernel(%arg0: i32, %arg1: memref<256x4xf32, #tpu.memory_space<vmem>>, %arg2: memref<4x32xbf16, #tpu.memory_space<vmem>>, %arg3: memref<1x32xf32, #tpu.memory_space<vmem>>, %arg4: memref<32x32xbf16, #tpu.memory_space<vmem>>, %arg5: memref<1x32xf32, #tpu.memory_space<vmem>>, %arg6: memref<256x32xf32, #tpu.memory_space<vmem>>) attributes {dimension_semantics = [#tpu.dimension_semantics<parallel>], iteration_bounds = array<i64: 2>, scalar_prefetch = 0 : i64, scratch_operands = 0 : i64, tpu.core_type = #tpu.core_type<tc>, window_params = [{transform_indices = @transform_0, window_bounds = array<i64: 256, 4>}, {pipeline_mode = #tpu.pipeline_mode<synchronous>, transform_indices = @transform_1, window_bounds = array<i64: 4, 32>}, {pipeline_mode = #tpu.pipeline_mode<synchronous>, transform_indices = @transform_2, window_bounds = array<i64: 1, 32>}, {pipeline_mode = #tpu.pipeline_mode<synchronous>, transform_indices = @transform_3, window_bounds = array<i64: 32, 32>}, {pipeline_mode = #tpu.pipeline_mode<synchronous>, transform_indices = @transform_4, window_bounds = array<i64: 1, 32>}, {transform_indices = @transform_5, window_bounds = array<i64: 256, 32>}]} {
    %c0 = arith.constant 0 : index
    %c0_0 = arith.constant 0 : index
    %0 = vector.load %arg1[%c0, %c0_0] : memref<256x4xf32, #tpu.memory_space<vmem>>, vector<256x4xf32>
    %1 = arith.truncf %0 : vector<256x4xf32> to vector<256x4xbf16>
    %c0_1 = arith.constant 0 : index
    %c0_2 = arith.constant 0 : index
    %2 = vector.load %arg2[%c0_1, %c0_2] : memref<4x32xbf16, #tpu.memory_space<vmem>>, vector<4x32xbf16>
    %cst = arith.constant dense<0.000000e+00> : vector<256x32xf32>
    %3 = tpu.matmul %1, %2, %cst {dimension_numbers = #tpu.dot_dimension_numbers<[1], [0], [0], [1], [0, 0, 1, 1], [], []>} : vector<256x4xbf16>, vector<4x32xbf16>, vector<256x32xf32> -> vector<256x32xf32>
    %c0_3 = arith.constant 0 : index
    %c0_4 = arith.constant 0 : index
    %4 = vector.load %arg3[%c0_3, %c0_4] : memref<1x32xf32, #tpu.memory_space<vmem>>, vector<1x32xf32>
    %5 = vector.broadcast %4 : vector<1x32xf32> to vector<256x32xf32>
    %6 = arith.addf %3, %5 : vector<256x32xf32>
    %7 = arith.negf %6 : vector<256x32xf32>
    %8 = math.exp %7 : vector<256x32xf32>
    %cst_5 = arith.constant 1.000000e+00 : f32
    %9 = vector.broadcast %cst_5 : f32 to vector<256x32xf32>
    %10 = arith.addf %9, %8 : vector<256x32xf32>
    %11 = arith.divf %9, %10 : vector<256x32xf32>
    %12 = arith.mulf %6, %11 : vector<256x32xf32>
    %13 = arith.truncf %12 : vector<256x32xf32> to vector<256x32xbf16>
    %c0_6 = arith.constant 0 : index
    %c0_7 = arith.constant 0 : index
    %14 = vector.load %arg4[%c0_6, %c0_7] : memref<32x32xbf16, #tpu.memory_space<vmem>>, vector<32x32xbf16>
    %cst_8 = arith.constant dense<0.000000e+00> : vector<256x32xf32>
    %15 = tpu.matmul %13, %14, %cst_8 {dimension_numbers = #tpu.dot_dimension_numbers<[1], [0], [0], [1], [0, 0, 1, 1], [], []>} : vector<256x32xbf16>, vector<32x32xbf16>, vector<256x32xf32> -> vector<256x32xf32>
    %16 = arith.addf %12, %15 : vector<256x32xf32>
    %c0_9 = arith.constant 0 : index
    %c0_10 = arith.constant 0 : index
    %17 = vector.load %arg5[%c0_9, %c0_10] : memref<1x32xf32, #tpu.memory_space<vmem>>, vector<1x32xf32>
    %18 = vector.broadcast %17 : vector<1x32xf32> to vector<256x32xf32>
    %19 = arith.addf %16, %18 : vector<256x32xf32>
    %c0_11 = arith.constant 0 : index
    %c0_12 = arith.constant 0 : index
    %20 = vector.load %arg6[%c0_11, %c0_12] : memref<256x32xf32, #tpu.memory_space<vmem>>, vector<256x32xf32>
    tpu.vector_store %arg6[%c0_11, %c0_12], %19 {strides = array<i32>} : memref<256x32xf32, #tpu.memory_space<vmem>>, vector<256x32xf32>,
    return
  }
  func.func @transform_0(%arg0: i32) -> (i32, i32) {
    %c0_i32 = arith.constant 0 : i32
    %c0_i32_0 = arith.constant 0 : i32
    return %arg0, %c0_i32 : i32, i32
  }
  func.func @transform_1(%arg0: i32) -> (i32, i32) {
    %c0_i32 = arith.constant 0 : i32
    %c0_i32_0 = arith.constant 0 : i32
    %c0_i32_1 = arith.constant 0 : i32
    return %c0_i32, %c0_i32_0 : i32, i32
  }
  func.func @transform_2(%arg0: i32) -> (i32, i32) {
    %c0_i32 = arith.constant 0 : i32
    %c0_i32_0 = arith.constant 0 : i32
    %c0_i32_1 = arith.constant 0 : i32
    return %c0_i32, %c0_i32_0 : i32, i32
  }
  func.func @transform_3(%arg0: i32) -> (i32, i32) {
    %c0_i32 = arith.constant 0 : i32
    %c0_i32_0 = arith.constant 0 : i32
    %c0_i32_1 = arith.constant 0 : i32
    return %c0_i32, %c0_i32_0 : i32, i32
  }
  func.func @transform_4(%arg0: i32) -> (i32, i32) {
    %c0_i32 = arith.constant 0 : i32
    %c0_i32_0 = arith.constant 0 : i32
    %c0_i32_1 = arith.constant 0 : i32
    return %c0_i32, %c0_i32_0 : i32, i32
  }
  func.func @transform_5(%arg0: i32) -> (i32, i32) {
    %c0_i32 = arith.constant 0 : i32
    %c0_i32_0 = arith.constant 0 : i32
    return %arg0, %c0_i32 : i32, i32
  }
}

</mosaic_0001>

<llo_original>
// kernel: tpu_custom_call.1
$region0: #{tpu_custom_call.1}
  #allocation0 [shape = 'u32[]', space=smem, size = 0x4, offset = 0x4, fixed_abs, tag = 'smem constant byte address 0x4 - core index']
  #allocation1 [shape = 'u32[72,128]{1,0:T(1,128)}', space=vmem, size = 0x9000, scoped, tag = 'internal scratch']
  %s0 = inlined_call_operand.vmem [shape: f32[512,4], index: 0, kind: input, shape index: {}]
  %s1 = inlined_call_operand.vmem [shape: bf16[4,32], index: 1, kind: input, shape index: {}]
  %s2 = inlined_call_operand.vmem [shape: f32[1,32], index: 2, kind: input, shape index: {}]
  %s3 = inlined_call_operand.vmem [shape: bf16[32,32], index: 3, kind: input, shape index: {}]
  %s4 = inlined_call_operand.vmem [shape: f32[1,32], index: 4, kind: input, shape index: {}]
  %s5 = inlined_call_operand.vmem [shape: f32[512,32], index: 5, kind: output, shape index: {}]
  %s6 = sld [smem:[#allocation0]]
  $region53: #{tpu_custom_call.1} parent=0
    _
  %s8 = ssub.s32 1, %s6
  %s9 = scalar_select 0, %s8, %s6
  loop: start=0, step=1, limit=4
  $region2: #{tpu_custom_call.1} parent=0 // loop_pre_header
    _
  $region3: #{tpu_custom_call.1} parent=0 // loop_header
    %s11 = sphi 0, %s15
    %p12 = scmp.ge.s32.totalorder %s11, 4
    %s21 = sphi 0, %s23
    %s24 = sphi 0, %s21
    %s25 = sphi 0, %s24
    %s41 = sphi 0, %s25
    %s45 = sphi 0, %s45
    %s47 = sphi 0, %s45
    %s48 = sphi 0, %s47
    %s62 = sphi 0, %s48
    %s66 = sphi 0, %s66
    %s68 = sphi 0, %s66
    %s69 = sphi 0, %s68
    %s83 = sphi 0, %s69
    %s87 = sphi 0, %s87
    %s89 = sphi 0, %s87
    %s90 = sphi 0, %s89
    %s104 = sphi 0, %s90
    %s108 = sphi 0, %s108
    %s110 = sphi 0, %s108
    %s111 = sphi 0, %s110
    %s125 = sphi 0, %s111
    %s131 = sphi 0, %s133
    %s134 = sphi 0, %s131
    %s135 = sphi 0, %s134
    %s151 = sphi 0, %s135
  $region4: #{tpu_custom_call.1} parent=0 // loop_header_branch
    %14 = sbr.rel (%p12) target = $region8
  $region5: #{tpu_custom_call.1} parent=0 // loop_body
    %s16 = ssub.s32 %s11, 1
    %s17 = ssub.s32 %s11, 2
    %s18 = sadd.s32 %s11, 1
    %s19 = ssub.s32 %s11, %s18
    %p20 = scmp.eq.s32.totalorder %s19, 0
    %s22 = sadd.s32 %s21, 1
    %s23 = scalar_select %p20, %s21, %s22
    %p26 = pneg %p20
    %p27 = scmp.eq.s32.totalorder %s11, 1
    %p28 = por %p26, %p27
    %p29 = scmp.ne.s32.totalorder %s21, %s24
    %p30 = scmp.eq.s32.totalorder %s11, 0
    %p31 = por %p29, %p30
    %p32 = scmp.ne.s32.totalorder %s21, %s24
    %p33 = scmp.eq.s32.totalorder %s16, 1
    %p34 = por %p32, %p33
    %p35 = scmp.ne.s32.totalorder %s24, %s25
    %p36 = scmp.eq.s32.totalorder %s16, 0
    %p37 = por %p35, %p36
    %p38 = scmp.ne.s32.totalorder %s24, %s25
    %p39 = scmp.eq.s32.totalorder %s17, 1
    %p40 = por %p38, %p39
    %p42 = scmp.ne.s32.totalorder %s25, %s41
    %p43 = scmp.eq.s32.totalorder %s17, 0
    %p44 = por %p42, %p43
    %s46 = sadd.s32 %s45, 1
    %p49 = scmp.eq.s32.totalorder %s11, 1
    %p50 = scmp.ne.s32.totalorder %s45, %s47
    %p51 = scmp.eq.s32.totalorder %s11, 0
    %p52 = por %p50, %p51
    %p53 = scmp.ne.s32.totalorder %s45, %s47
    %p54 = scmp.eq.s32.totalorder %s16, 1
    %p55 = por %p53, %p54
    %p56 = scmp.ne.s32.totalorder %s47, %s48
    %p57 = scmp.eq.s32.totalorder %s16, 0
    %p58 = por %p56, %p57
    %p59 = scmp.ne.s32.totalorder %s47, %s48
    %p60 = scmp.eq.s32.totalorder %s17, 1
    %p61 = por %p59, %p60
    %p63 = scmp.ne.s32.totalorder %s48, %s62
    %p64 = scmp.eq.s32.totalorder %s17, 0
    %p65 = por %p63, %p64
    %s67 = sadd.s32 %s66, 1
    %p70 = scmp.eq.s32.totalorder %s11, 1
    %p71 = scmp.ne.s32.totalorder %s66, %s68
    %p72 = scmp.eq.s32.totalorder %s11, 0
    %p73 = por %p71, %p72
    %p74 = scmp.ne.s32.totalorder %s66, %s68
    %p75 = scmp.eq.s32.totalorder %s16, 1
    %p76 = por %p74, %p75
    %p77 = scmp.ne.s32.totalorder %s68, %s69
    %p78 = scmp.eq.s32.totalorder %s16, 0
    %p79 = por %p77, %p78
    %p80 = scmp.ne.s32.totalorder %s68, %s69
    %p81 = scmp.eq.s32.totalorder %s17, 1
    %p82 = por %p80, %p81
    %p84 = scmp.ne.s32.totalorder %s69, %s83
    %p85 = scmp.eq.s32.totalorder %s17, 0
    %p86 = por %p84, %p85
    %s88 = sadd.s32 %s87, 1
    %p91 = scmp.eq.s32.totalorder %s11, 1
    %p92 = scmp.ne.s32.totalorder %s87, %s89
    %p93 = scmp.eq.s32.totalorder %s11, 0
    %p94 = por %p92, %p93
    %p95 = scmp.ne.s32.totalorder %s87, %s89
    %p96 = scmp.eq.s32.totalorder %s16, 1
    %p97 = por %p95, %p96
    %p98 = scmp.ne.s32.totalorder %s89, %s90
    %p99 = scmp.eq.s32.totalorder %s16, 0
    %p100 = por %p98, %p99
    %p101 = scmp.ne.s32.totalorder %s89, %s90
    %p102 = scmp.eq.s32.totalorder %s17, 1
    %p103 = por %p101, %p102
    %p105 = scmp.ne.s32.totalorder %s90, %s104
    %p106 = scmp.eq.s32.totalorder %s17, 0
    %p107 = por %p105, %p106
    %s109 = sadd.s32 %s108, 1
    %p112 = scmp.eq.s32.totalorder %s11, 1
    %p113 = scmp.ne.s32.totalorder %s108, %s110
    %p114 = scmp.eq.s32.totalorder %s11, 0
    %p115 = por %p113, %p114
    %p116 = scmp.ne.s32.totalorder %s108, %s110
    %p117 = scmp.eq.s32.totalorder %s16, 1
    %p118 = por %p116, %p117
    %p119 = scmp.ne.s32.totalorder %s110, %s111
    %p120 = scmp.eq.s32.totalorder %s16, 0
    %p121 = por %p119, %p120
    %p122 = scmp.ne.s32.totalorder %s110, %s111
    %p123 = scmp.eq.s32.totalorder %s17, 1
    %p124 = por %p122, %p123
    %p126 = scmp.ne.s32.totalorder %s111, %s125
    %p127 = scmp.eq.s32.totalorder %s17, 0
    %p128 = por %p126, %p127
    %s129 = ssub.s32 %s11, %s18
    %p130 = scmp.eq.s32.totalorder %s129, 0
    %s132 = sadd.s32 %s131, 1
    %s133 = scalar_select %p130, %s131, %s132
    %p136 = pneg %p130
    %p137 = scmp.eq.s32.totalorder %s11, 1
    %p138 = por %p136, %p137
    %p139 = scmp.ne.s32.totalorder %s131, %s134
    %p140 = scmp.eq.s32.totalorder %s11, 0
    %p141 = por %p139, %p140
    %p142 = scmp.ne.s32.totalorder %s131, %s134
    %p143 = scmp.eq.s32.totalorder %s16, 1
    %p144 = por %p142, %p143
    %p145 = scmp.ne.s32.totalorder %s134, %s135
    %p146 = scmp.eq.s32.totalorder %s16, 0
    %p147 = por %p145, %p146
    %p148 = scmp.ne.s32.totalorder %s134, %s135
    %p149 = scmp.eq.s32.totalorder %s17, 1
    %p150 = por %p148, %p149
    %p152 = scmp.ne.s32.totalorder %s135, %s151
    %p153 = scmp.eq.s32.totalorder %s17, 0
    %p154 = por %p152, %p153
    %p155 = scmp.le.s32.totalorder 1, %s11
    %p156 = scmp.lt.s32.totalorder %s11, 3
    %p157 = pnand %p155, %p156
    %p158 = pneg %p157
    // Predicated region
    $region9: #{tpu_custom_call.1} parent=5 // pred_check
      _
    $region10: #{tpu_custom_call.1} parent=5 // pred_check_branch
      %160 = sbr.rel (%p157) target = $region12
    $region11: #{tpu_custom_call.1} parent=5 // pred_region
      %s161 = ssub.s32 %s11, 1
      // Predicated region
      $region13: #{tpu_custom_call.1} parent=11 // pred_check
        %p162 = pneg %p58
      $region14: #{tpu_custom_call.1} parent=11 // pred_check_branch
        %164 = sbr.rel (%p162) target = $region16
      $region15: #{tpu_custom_call.1} parent=11 // pred_region
        _
      $region16: #{tpu_custom_call.1} parent=11 // pred_fallthru
        _
      // Predicated region
      $region17: #{tpu_custom_call.1} parent=11 // pred_check
        %p165 = pneg %p79
      $region18: #{tpu_custom_call.1} parent=11 // pred_check_branch
        %167 = sbr.rel (%p165) target = $region20
      $region19: #{tpu_custom_call.1} parent=11 // pred_region
        _
      $region20: #{tpu_custom_call.1} parent=11 // pred_fallthru
        _
      // Predicated region
      $region21: #{tpu_custom_call.1} parent=11 // pred_check
        %p168 = pneg %p100
      $region22: #{tpu_custom_call.1} parent=11 // pred_check_branch
        %170 = sbr.rel (%p168) target = $region24
      $region23: #{tpu_custom_call.1} parent=11 // pred_region
        _
      $region24: #{tpu_custom_call.1} parent=11 // pred_fallthru
        _
      // Predicated region
      $region25: #{tpu_custom_call.1} parent=11 // pred_check
        %p171 = pneg %p121
      $region26: #{tpu_custom_call.1} parent=11 // pred_check_branch
        %173 = sbr.rel (%p171) target = $region28
      $region27: #{tpu_custom_call.1} parent=11 // pred_region
        _
      $region28: #{tpu_custom_call.1} parent=11 // pred_fallthru
        _
    $region12: #{tpu_custom_call.1} parent=5 // pred_fallthru
      _
    %p174 = scmp.lt.s32.totalorder %s11, 2
    // Predicated region
    $region29: #{tpu_custom_call.1} parent=5 // pred_check
      %p175 = pneg %p174
    $region30: #{tpu_custom_call.1} parent=5 // pred_check_branch
      %177 = sbr.rel (%p175) target = $region32
    $region31: #{tpu_custom_call.1} parent=5 // pred_region
      // Predicated region
      $region33: #{tpu_custom_call.1} parent=31 // pred_check
        %p178 = pneg %p31
      $region34: #{tpu_custom_call.1} parent=31 // pred_check_branch
        %180 = sbr.rel (%p178) target = $region36
      $region35: #{tpu_custom_call.1} parent=31 // pred_region
        %s181 = smul.u32 32, %s11
        %p182 = scmp.lt.s32.totalorder %s181, 63
        %s183 = scalar_select %p182, %s181, 63
        %s184 = smul.addr %s183, 8
        %s185 = scalar_lea.vmem %s0, %s184
        %s186 = smul.u32 32, %s11
      $region36: #{tpu_custom_call.1} parent=31 // pred_fallthru
        _
    $region32: #{tpu_custom_call.1} parent=5 // pred_fallthru
      _
    %p187 = scmp.le.s32.totalorder 1, %s11
    %p188 = scmp.lt.s32.totalorder %s11, 3
    %p189 = pnand %p187, %p188
    %p190 = pneg %p189
    // Predicated region
    $region37: #{tpu_custom_call.1} parent=5 // pred_check
      _
    $region38: #{tpu_custom_call.1} parent=5 // pred_check_branch
      %192 = sbr.rel (%p189) target = $region40
    $region39: #{tpu_custom_call.1} parent=5 // pred_region
      %s193 = ssub.s32 %s11, 1
      %s194 = smul.u32 32, %s16
      %p195 = scmp.lt.s32.totalorder %s194, 63
      %s196 = scalar_select %p195, %s194, 63
      %s197 = smul.addr %s196, 8
      %s198 = scalar_lea.vmem %s0, %s197
      %p199 = pneg %p37
      %p200 = pneg %p34
      %p201 = pneg %p58
      %p202 = pneg %p55
      %p203 = pneg %p79
      %p204 = pneg %p76
      %p205 = pneg %p100
      %p206 = pneg %p97
      %p207 = pneg %p121
      %p208 = pneg %p118
      %p209 = pneg %p147
      %p210 = pneg %p144
      %s211 = smul.u32 32, %s16
      %p212 = scmp.lt.s32.totalorder %s211, 63
      %s213 = scalar_select %p212, %s211, 63
      %s214 = smul.addr %s213, 8
      %s215 = scalar_lea.vmem %s5, %s214
      %s216 = smul.u32 32, %s16
      %p217 = scmp.lt.s32.totalorder %s216, 63
      %s218 = scalar_select %p217, %s216, 63
      %s219 = smul.addr %s218, 8
      %s220 = scalar_lea.vmem %s0, %s219
      %s221 = smul.u32 32, %s16
      %s222 = smul.u32 32, %s16
      %p223 = scmp.lt.s32.totalorder %s222, 63
      %s224 = scalar_select %p223, %s222, 63
      %s225 = smul.addr %s224, 8
      %s226 = scalar_lea.vmem %s5, %s225
      %s227 = smul.u32 32, %s16
      %v229 = vld [vmem:[%s220] sm:$0xff]
      %v230 = vld [vmem:[%s220 + $0x8] sm:$0xff]
      %v231 = vld [vmem:[%s220 + $0x10] sm:$0xff]
      %v232 = vld [vmem:[%s220 + $0x18] sm:$0xff]
      %v233 = vld [vmem:[%s220 + $0x20] sm:$0xff]
      %v234 = vld [vmem:[%s220 + $0x28] sm:$0xff]
      %v235 = vld [vmem:[%s220 + $0x30] sm:$0xff]
      %v236 = vld [vmem:[%s220 + $0x38] sm:$0xff]
      %v237 = vld [vmem:[%s220 + $0x40] sm:$0xff]
      %v238 = vld [vmem:[%s220 + $0x48] sm:$0xff]
      %v239 = vld [vmem:[%s220 + $0x50] sm:$0xff]
      %v240 = vld [vmem:[%s220 + $0x58] sm:$0xff]
      %v241 = vld [vmem:[%s220 + $0x60] sm:$0xff]
      %v242 = vld [vmem:[%s220 + $0x68] sm:$0xff]
      %v243 = vld [vmem:[%s220 + $0x70] sm:$0xff]
      %v244 = vld [vmem:[%s220 + $0x78] sm:$0xff]
      %v245 = vld [vmem:[%s220 + $0x80] sm:$0xff]
      %v246 = vld [vmem:[%s220 + $0x88] sm:$0xff]
      %v247 = vld [vmem:[%s220 + $0x90] sm:$0xff]
      %v248 = vld [vmem:[%s220 + $0x98] sm:$0xff]
      %v249 = vld [vmem:[%s220 + $0xa0] sm:$0xff]
      %v250 = vld [vmem:[%s220 + $0xa8] sm:$0xff]
      %v251 = vld [vmem:[%s220 + $0xb0] sm:$0xff]
      %v252 = vld [vmem:[%s220 + $0xb8] sm:$0xff]
      %v253 = vld [vmem:[%s220 + $0xc0] sm:$0xff]
      %v254 = vld [vmem:[%s220 + $0xc8] sm:$0xff]
      %v255 = vld [vmem:[%s220 + $0xd0] sm:$0xff]
      %v256 = vld [vmem:[%s220 + $0xd8] sm:$0xff]
      %v257 = vld [vmem:[%s220 + $0xe0] sm:$0xff]
      %v258 = vld [vmem:[%s220 + $0xe8] sm:$0xff]
      %v259 = vld [vmem:[%s220 + $0xf0] sm:$0xff]
      %v260 = vld [vmem:[%s220 + $0xf8] sm:$0xff]
      %v261 = vpack.c.bf16 %v230, %v229
      %v262 = vpack.c.bf16 %v232, %v231
      %v263 = vpack.c.bf16 %v234, %v233
      %v264 = vpack.c.bf16 %v236, %v235
      %v265 = vpack.c.bf16 %v238, %v237
      %v266 = vpack.c.bf16 %v240, %v239
      %v267 = vpack.c.bf16 %v242, %v241
      %v268 = vpack.c.bf16 %v244, %v243
      %v269 = vpack.c.bf16 %v246, %v245
      %v270 = vpack.c.bf16 %v248, %v247
      %v271 = vpack.c.bf16 %v250, %v249
      %v272 = vpack.c.bf16 %v252, %v251
      %v273 = vpack.c.bf16 %v254, %v253
      %v274 = vpack.c.bf16 %v256, %v255
      %v275 = vpack.c.bf16 %v258, %v257
      %v276 = vpack.c.bf16 %v260, %v259
      %v277 = vld [vmem:[%s1] sm:$0x3]
      %v278 = vld [vmem:[%s2] sm:$0x1]
      %v280 = vperm.slane %v278, 0
      %vm282 = vcmask 31744
      %v284 = vsel %vm282, %v261, 0
      %v287 = vsel %vm282, %v262, 0
      %v290 = vsel %vm282, %v263, 0
      %v293 = vsel %vm282, %v264, 0
      %v296 = vsel %vm282, %v265, 0
      %v299 = vsel %vm282, %v266, 0
      %v302 = vsel %vm282, %v267, 0
      %v305 = vsel %vm282, %v268, 0
      %v308 = vsel %vm282, %v269, 0
      %v311 = vsel %vm282, %v270, 0
      %v314 = vsel %vm282, %v271, 0
      %v317 = vsel %vm282, %v272, 0
      %v320 = vsel %vm282, %v273, 0
      %v323 = vsel %vm282, %v274, 0
      %v326 = vsel %vm282, %v275, 0
      %v329 = vsel %vm282, %v276, 0
      %vm331 = vcmask 1041408
      %v333 = vsel %vm331, %v277, 0
      %335 = vmatpush.bf16.msra.mxu0 0
      %336 = vmatpush.bf16.msra.mxu0 0
      %337 = vmatpush.bf16.msra.mxu0 0
      %338 = vmatpush.bf16.msra.mxu0 0
      %339 = vmatpush.bf16.msra.mxu0 0
      %340 = vmatpush.bf16.msra.mxu0 0
      %341 = vmatpush.bf16.msra.mxu0 0
      %342 = vmatpush.bf16.msra.mxu0 %v333
      %343 = vmatmul.bf16.gmra.mxu0 %v284
      %v344 = vpop.f32.mrf.mxu0
      %v345 = vadd.f32 %v280, %v344
      %v346 = vpop.f32.mrf.mxu0
      %v347 = vadd.f32 %v280, %v346
      %348 = vmatmul.bf16.gmra.mxu0 %v287
      %v349 = vpop.f32.mrf.mxu0
      %v350 = vadd.f32 %v280, %v349
      %v351 = vpop.f32.mrf.mxu0
      %v352 = vadd.f32 %v280, %v351
      %353 = vmatmul.bf16.gmra.mxu0 %v290
      %v354 = vpop.f32.mrf.mxu0
      %v355 = vadd.f32 %v280, %v354
      %v356 = vpop.f32.mrf.mxu0
      %v357 = vadd.f32 %v280, %v356
      %358 = vmatmul.bf16.gmra.mxu0 %v293
      %v359 = vpop.f32.mrf.mxu0
      %v360 = vadd.f32 %v280, %v359
      %v361 = vpop.f32.mrf.mxu0
      %v362 = vadd.f32 %v280, %v361
      %363 = vmatmul.bf16.gmra.mxu0 %v296
      %v364 = vpop.f32.mrf.mxu0
      %v365 = vadd.f32 %v280, %v364
      %v366 = vpop.f32.mrf.mxu0
      %v367 = vadd.f32 %v280, %v366
      %368 = vmatmul.bf16.gmra.mxu0 %v299
      %v369 = vpop.f32.mrf.mxu0
      %v370 = vadd.f32 %v280, %v369
      %v371 = vpop.f32.mrf.mxu0
      %v372 = vadd.f32 %v280, %v371
      %373 = vmatmul.bf16.gmra.mxu0 %v302
      %v374 = vpop.f32.mrf.mxu0
      %v375 = vadd.f32 %v280, %v374
      %v376 = vpop.f32.mrf.mxu0
      %v377 = vadd.f32 %v280, %v376
      %378 = vmatmul.bf16.gmra.mxu0 %v305
      %v379 = vpop.f32.mrf.mxu0
      %v380 = vadd.f32 %v280, %v379
      %v381 = vpop.f32.mrf.mxu0
      %v382 = vadd.f32 %v280, %v381
      %383 = vmatmul.bf16.gmra.mxu0 %v308
      %v384 = vpop.f32.mrf.mxu0
      %v385 = vadd.f32 %v280, %v384
      %v386 = vpop.f32.mrf.mxu0
      %v387 = vadd.f32 %v280, %v386
      %388 = vmatmul.bf16.gmra.mxu0 %v311
      %v389 = vpop.f32.mrf.mxu0
      %v390 = vadd.f32 %v280, %v389
      %v391 = vpop.f32.mrf.mxu0
      %v392 = vadd.f32 %v280, %v391
      %393 = vmatmul.bf16.gmra.mxu0 %v314
      %v394 = vpop.f32.mrf.mxu0
      %v395 = vadd.f32 %v280, %v394
      %v396 = vpop.f32.mrf.mxu0
      %v397 = vadd.f32 %v280, %v396
      %398 = vmatmul.bf16.gmra.mxu0 %v317
      %v399 = vpop.f32.mrf.mxu0
      %v400 = vadd.f32 %v280, %v399
      %v401 = vpop.f32.mrf.mxu0
      %v402 = vadd.f32 %v280, %v401
      %403 = vmatmul.bf16.gmra.mxu0 %v320
      %v404 = vpop.f32.mrf.mxu0
      %v405 = vadd.f32 %v280, %v404
      %v406 = vpop.f32.mrf.mxu0
      %v407 = vadd.f32 %v280, %v406
      %408 = vmatmul.bf16.gmra.mxu0 %v323
      %v409 = vpop.f32.mrf.mxu0
      %v410 = vadd.f32 %v280, %v409
      %v411 = vpop.f32.mrf.mxu0
      %v412 = vadd.f32 %v280, %v411
      %413 = vmatmul.bf16.gmra.mxu0 %v326
      %v414 = vpop.f32.mrf.mxu0
      %v415 = vadd.f32 %v280, %v414
      %v416 = vpop.f32.mrf.mxu0
      %v417 = vadd.f32 %v280, %v416
      %418 = vmatmul.bf16.gmra.mxu0 %v329
      %v419 = vpop.f32.mrf.mxu0
      %v420 = vadd.f32 %v280, %v419
      %v421 = vpop.f32.mrf.mxu0
      %v422 = vadd.f32 %v280, %v421
      %423 = vdwg.mxu0
      %v424 = vxor.u32 %v345, 2147483648
      %v425 = vxor.u32 %v347, 2147483648
      %v426 = vxor.u32 %v350, 2147483648
      %v427 = vxor.u32 %v352, 2147483648
      %v428 = vxor.u32 %v355, 2147483648
      %v429 = vxor.u32 %v357, 2147483648
      %v430 = vxor.u32 %v360, 2147483648
      %v431 = vxor.u32 %v362, 2147483648
      %v432 = vxor.u32 %v365, 2147483648
      %v433 = vxor.u32 %v367, 2147483648
      %v434 = vxor.u32 %v370, 2147483648
      %v435 = vxor.u32 %v372, 2147483648
      %v436 = vxor.u32 %v375, 2147483648
      %v437 = vxor.u32 %v377, 2147483648
      %v438 = vxor.u32 %v380, 2147483648
      %v439 = vxor.u32 %v382, 2147483648
      %v440 = vxor.u32 %v385, 2147483648
      %v441 = vxor.u32 %v387, 2147483648
      %v442 = vxor.u32 %v390, 2147483648
      %v443 = vxor.u32 %v392, 2147483648
      %v444 = vxor.u32 %v395, 2147483648
      %v445 = vxor.u32 %v397, 2147483648
      %v446 = vxor.u32 %v400, 2147483648
      %v447 = vxor.u32 %v402, 2147483648
      %v448 = vxor.u32 %v405, 2147483648
      %v449 = vxor.u32 %v407, 2147483648
      %v450 = vxor.u32 %v410, 2147483648
      %v451 = vxor.u32 %v412, 2147483648
      %v452 = vxor.u32 %v415, 2147483648
      %v453 = vxor.u32 %v417, 2147483648
      %v454 = vxor.u32 %v420, 2147483648
      %v455 = vxor.u32 %v422, 2147483648
      %v456 = vmul.f32 %v424, 1.442695
      %v457 = vpow.pop %v456
      %v458 = vmul.f32 %v425, 1.442695
      %v459 = vpow.pop %v458
      %v460 = vmul.f32 %v426, 1.442695
      %v461 = vpow.pop %v460
      %v462 = vmul.f32 %v427, 1.442695
      %v463 = vpow.pop %v462
      %v464 = vmul.f32 %v428, 1.442695
      %v465 = vpow.pop %v464
      %v466 = vmul.f32 %v429, 1.442695
      %v467 = vpow.pop %v466
      %v468 = vmul.f32 %v430, 1.442695
      %v469 = vpow.pop %v468
      %v470 = vmul.f32 %v431, 1.442695
      %v471 = vpow.pop %v470
      %v472 = vmul.f32 %v432, 1.442695
      %v473 = vpow.pop %v472
      %v474 = vmul.f32 %v433, 1.442695
      %v475 = vpow.pop %v474
      %v476 = vmul.f32 %v434, 1.442695
      %v477 = vpow.pop %v476
      %v478 = vmul.f32 %v435, 1.442695
      %v479 = vpow.pop %v478
      %v480 = vmul.f32 %v436, 1.442695
      %v481 = vpow.pop %v480
      %v482 = vmul.f32 %v437, 1.442695
      %v483 = vpow.pop %v482
      %v484 = vmul.f32 %v438, 1.442695
      %v485 = vpow.pop %v484
      %v486 = vmul.f32 %v439, 1.442695
      %v487 = vpow.pop %v486
      %v488 = vmul.f32 %v440, 1.442695
      %v489 = vpow.pop %v488
      %v490 = vmul.f32 %v441, 1.442695
      %v491 = vpow.pop %v490
      %v492 = vmul.f32 %v442, 1.442695
      %v493 = vpow.pop %v492
      %v494 = vmul.f32 %v443, 1.442695
      %v495 = vpow.pop %v494
      %v496 = vmul.f32 %v444, 1.442695
      %v497 = vpow.pop %v496
      %v498 = vmul.f32 %v445, 1.442695
      %v499 = vpow.pop %v498
      %v500 = vmul.f32 %v446, 1.442695
      %v501 = vpow.pop %v500
      %v502 = vmul.f32 %v447, 1.442695
      %v503 = vpow.pop %v502
      %v504 = vmul.f32 %v448, 1.442695
      %v505 = vpow.pop %v504
      %v506 = vmul.f32 %v449, 1.442695
      %v507 = vpow.pop %v506
      %v508 = vmul.f32 %v450, 1.442695
      %v509 = vpow.pop %v508
      %v510 = vmul.f32 %v451, 1.442695
      %v511 = vpow.pop %v510
      %v512 = vmul.f32 %v452, 1.442695
      %v513 = vpow.pop %v512
      %v514 = vmul.f32 %v453, 1.442695
      %v515 = vpow.pop %v514
      %v516 = vmul.f32 %v454, 1.442695
      %v517 = vpow.pop %v516
      %v518 = vmul.f32 %v455, 1.442695
      %v519 = vpow.pop %v518
      %v520 = vadd.f32 %v457, 1.0
      %v521 = vadd.f32 %v459, 1.0
      %v522 = vadd.f32 %v461, 1.0
      %v523 = vadd.f32 %v463, 1.0
      %v524 = vadd.f32 %v465, 1.0
      %v525 = vadd.f32 %v467, 1.0
      %v526 = vadd.f32 %v469, 1.0
      %v527 = vadd.f32 %v471, 1.0
      %v528 = vadd.f32 %v473, 1.0
      %v529 = vadd.f32 %v475, 1.0
      %v530 = vadd.f32 %v477, 1.0
      %v531 = vadd.f32 %v479, 1.0
      %v532 = vadd.f32 %v481, 1.0
      %v533 = vadd.f32 %v483, 1.0
      %v534 = vadd.f32 %v485, 1.0
      %v535 = vadd.f32 %v487, 1.0
      %v536 = vadd.f32 %v489, 1.0
      %v537 = vadd.f32 %v491, 1.0
      %v538 = vadd.f32 %v493, 1.0
      %v539 = vadd.f32 %v495, 1.0
      %v540 = vadd.f32 %v497, 1.0
      %v541 = vadd.f32 %v499, 1.0
      %v542 = vadd.f32 %v501, 1.0
      %v543 = vadd.f32 %v503, 1.0
      %v544 = vadd.f32 %v505, 1.0
      %v545 = vadd.f32 %v507, 1.0
      %v546 = vadd.f32 %v509, 1.0
      %v547 = vadd.f32 %v511, 1.0
      %v548 = vadd.f32 %v513, 1.0
      %v549 = vadd.f32 %v515, 1.0
      %v550 = vadd.f32 %v517, 1.0
      %v551 = vadd.f32 %v519, 1.0
      %v552 = vrcp.pop %v520
      %v553 = vmul.f32 %v520, %v552
      %v554 = vsub.f32 1.0, %v553
      %v555 = vmul.f32 %v552, %v554
      %v556 = vadd.f32 %v552, %v555
      %vm557 = vweird.f32 %v520
      %vm558 = vweird.f32 %v552
      %vm559 = vmor %vm557, %vm558
      %v560 = vsel %vm559, %v552, %v556
      %v561 = vand.u32 2147483647, %v520
      %vm562 = vcmp.eq.f32.partialorder %v561, 8.507059e+37
      %v563 = vand.u32 %v520, 2147483648
      %v564 = vor.u32 1.1754944e-38, %v563
      %v565 = vsel %vm562, %v564, %v560
      %v566 = vmul.f32 1.0, %v565
      %v567 = vrcp.pop %v521
      %v568 = vmul.f32 %v521, %v567
      %v569 = vsub.f32 1.0, %v568
      %v570 = vmul.f32 %v567, %v569
      %v571 = vadd.f32 %v567, %v570
      %vm572 = vweird.f32 %v521
      %vm573 = vweird.f32 %v567
      %vm574 = vmor %vm572, %vm573
      %v575 = vsel %vm574, %v567, %v571
      %v576 = vand.u32 2147483647, %v521
      %vm577 = vcmp.eq.f32.partialorder %v576, 8.507059e+37
      %v578 = vand.u32 %v521, 2147483648
      %v579 = vor.u32 1.1754944e-38, %v578
      %v580 = vsel %vm577, %v579, %v575
      %v581 = vmul.f32 1.0, %v580
      %v582 = vrcp.pop %v522
      %v583 = vmul.f32 %v522, %v582
      %v584 = vsub.f32 1.0, %v583
      %v585 = vmul.f32 %v582, %v584
      %v586 = vadd.f32 %v582, %v585
      %vm587 = vweird.f32 %v522
      %vm588 = vweird.f32 %v582
      %vm589 = vmor %vm587, %vm588
      %v590 = vsel %vm589, %v582, %v586
      %v591 = vand.u32 2147483647, %v522
      %vm592 = vcmp.eq.f32.partialorder %v591, 8.507059e+37
      %v593 = vand.u32 %v522, 2147483648
      %v594 = vor.u32 1.1754944e-38, %v593
      %v595 = vsel %vm592, %v594, %v590
      %v596 = vmul.f32 1.0, %v595
      %v597 = vrcp.pop %v523
      %v598 = vmul.f32 %v523, %v597
      %v599 = vsub.f32 1.0, %v598
      %v600 = vmul.f32 %v597, %v599
      %v601 = vadd.f32 %v597, %v600
      %vm602 = vweird.f32 %v523
      %vm603 = vweird.f32 %v597
      %vm604 = vmor %vm602, %vm603
      %v605 = vsel %vm604, %v597, %v601
      %v606 = vand.u32 2147483647, %v523
      %vm607 = vcmp.eq.f32.partialorder %v606, 8.507059e+37
      %v608 = vand.u32 %v523, 2147483648
      %v609 = vor.u32 1.1754944e-38, %v608
      %v610 = vsel %vm607, %v609, %v605
      %v611 = vmul.f32 1.0, %v610
      %v612 = vrcp.pop %v524
      %v613 = vmul.f32 %v524, %v612
      %v614 = vsub.f32 1.0, %v613
      %v615 = vmul.f32 %v612, %v614
      %v616 = vadd.f32 %v612, %v615
      %vm617 = vweird.f32 %v524
      %vm618 = vweird.f32 %v612
      %vm619 = vmor %vm617, %vm618
      %v620 = vsel %vm619, %v612, %v616
      %v621 = vand.u32 2147483647, %v524
      %vm622 = vcmp.eq.f32.partialorder %v621, 8.507059e+37
      %v623 = vand.u32 %v524, 2147483648
      %v624 = vor.u32 1.1754944e-38, %v623
      %v625 = vsel %vm622, %v624, %v620
      %v626 = vmul.f32 1.0, %v625
      %v627 = vrcp.pop %v525
      %v628 = vmul.f32 %v525, %v627
      %v629 = vsub.f32 1.0, %v628
      %v630 = vmul.f32 %v627, %v629
      %v631 = vadd.f32 %v627, %v630
      %vm632 = vweird.f32 %v525
      %vm633 = vweird.f32 %v627
      %vm634 = vmor %vm632, %vm633
      %v635 = vsel %vm634, %v627, %v631
      %v636 = vand.u32 2147483647, %v525
      %vm637 = vcmp.eq.f32.partialorder %v636, 8.507059e+37
      %v638 = vand.u32 %v525, 2147483648
      %v639 = vor.u32 1.1754944e-38, %v638
      %v640 = vsel %vm637, %v639, %v635
      %v641 = vmul.f32 1.0, %v640
      %v642 = vrcp.pop %v526
      %v643 = vmul.f32 %v526, %v642
      %v644 = vsub.f32 1.0, %v643
      %v645 = vmul.f32 %v642, %v644
      %v646 = vadd.f32 %v642, %v645
      %vm647 = vweird.f32 %v526
      %vm648 = vweird.f32 %v642
      %vm649 = vmor %vm647, %vm648
      %v650 = vsel %vm649, %v642, %v646
      %v651 = vand.u32 2147483647, %v526
      %vm652 = vcmp.eq.f32.partialorder %v651, 8.507059e+37
      %v653 = vand.u32 %v526, 2147483648
      %v654 = vor.u32 1.1754944e-38, %v653
      %v655 = vsel %vm652, %v654, %v650
      %v656 = vmul.f32 1.0, %v655
      %v657 = vrcp.pop %v527
      %v658 = vmul.f32 %v527, %v657
      %v659 = vsub.f32 1.0, %v658
      %v660 = vmul.f32 %v657, %v659
      %v661 = vadd.f32 %v657, %v660
      %vm662 = vweird.f32 %v527
      %vm663 = vweird.f32 %v657
      %vm664 = vmor %vm662, %vm663
      %v665 = vsel %vm664, %v657, %v661
      %v666 = vand.u32 2147483647, %v527
      %vm667 = vcmp.eq.f32.partialorder %v666, 8.507059e+37
      %v668 = vand.u32 %v527, 2147483648
      %v669 = vor.u32 1.1754944e-38, %v668
      %v670 = vsel %vm667, %v669, %v665
      %v671 = vmul.f32 1.0, %v670
      %v672 = vrcp.pop %v528
      %v673 = vmul.f32 %v528, %v672
      %v674 = vsub.f32 1.0, %v673
      %v675 = vmul.f32 %v672, %v674
      %v676 = vadd.f32 %v672, %v675
      %vm677 = vweird.f32 %v528
      %vm678 = vweird.f32 %v672
      %vm679 = vmor %vm677, %vm678
      %v680 = vsel %vm679, %v672, %v676
      %v681 = vand.u32 2147483647, %v528
      %vm682 = vcmp.eq.f32.partialorder %v681, 8.507059e+37
      %v683 = vand.u32 %v528, 2147483648
      %v684 = vor.u32 1.1754944e-38, %v683
      %v685 = vsel %vm682, %v684, %v680
      %v686 = vmul.f32 1.0, %v685
      %v687 = vrcp.pop %v529
      %v688 = vmul.f32 %v529, %v687
      %v689 = vsub.f32 1.0, %v688
      %v690 = vmul.f32 %v687, %v689
      %v691 = vadd.f32 %v687, %v690
      %vm692 = vweird.f32 %v529
      %vm693 = vweird.f32 %v687
      %vm694 = vmor %vm692, %vm693
      %v695 = vsel %vm694, %v687, %v691
      %v696 = vand.u32 2147483647, %v529
      %vm697 = vcmp.eq.f32.partialorder %v696, 8.507059e+37
      %v698 = vand.u32 %v529, 2147483648
      %v699 = vor.u32 1.1754944e-38, %v698
      %v700 = vsel %vm697, %v699, %v695
      %v701 = vmul.f32 1.0, %v700
      %v702 = vrcp.pop %v530
      %v703 = vmul.f32 %v530, %v702
      %v704 = vsub.f32 1.0, %v703
      %v705 = vmul.f32 %v702, %v704
      %v706 = vadd.f32 %v702, %v705
      %vm707 = vweird.f32 %v530
      %vm708 = vweird.f32 %v702
      %vm709 = vmor %vm707, %vm708
      %v710 = vsel %vm709, %v702, %v706
      %v711 = vand.u32 2147483647, %v530
      %vm712 = vcmp.eq.f32.partialorder %v711, 8.507059e+37
      %v713 = vand.u32 %v530, 2147483648
      %v714 = vor.u32 1.1754944e-38, %v713
      %v715 = vsel %vm712, %v714, %v710
      %v716 = vmul.f32 1.0, %v715
      %v717 = vrcp.pop %v531
      %v718 = vmul.f32 %v531, %v717
      %v719 = vsub.f32 1.0, %v718
      %v720 = vmul.f32 %v717, %v719
      %v721 = vadd.f32 %v717, %v720
      %vm722 = vweird.f32 %v531
      %vm723 = vweird.f32 %v717
      %vm724 = vmor %vm722, %vm723
      %v725 = vsel %vm724, %v717, %v721
      %v726 = vand.u32 2147483647, %v531
      %vm727 = vcmp.eq.f32.partialorder %v726, 8.507059e+37
      %v728 = vand.u32 %v531, 2147483648
      %v729 = vor.u32 1.1754944e-38, %v728
      %v730 = vsel %vm727, %v729, %v725
      %v731 = vmul.f32 1.0, %v730
      %v732 = vrcp.pop %v532
      %v733 = vmul.f32 %v532, %v732
      %v734 = vsub.f32 1.0, %v733
      %v735 = vmul.f32 %v732, %v734
      %v736 = vadd.f32 %v732, %v735
      %vm737 = vweird.f32 %v532
      %vm738 = vweird.f32 %v732
      %vm739 = vmor %vm737, %vm738
      %v740 = vsel %vm739, %v732, %v736
      %v741 = vand.u32 2147483647, %v532
      %vm742 = vcmp.eq.f32.partialorder %v741, 8.507059e+37
      %v743 = vand.u32 %v532, 2147483648
      %v744 = vor.u32 1.1754944e-38, %v743
      %v745 = vsel %vm742, %v744, %v740
      %v746 = vmul.f32 1.0, %v745
      %v747 = vrcp.pop %v533
      %v748 = vmul.f32 %v533, %v747
      %v749 = vsub.f32 1.0, %v748
      %v750 = vmul.f32 %v747, %v749
      %v751 = vadd.f32 %v747, %v750
      %vm752 = vweird.f32 %v533
      %vm753 = vweird.f32 %v747
      %vm754 = vmor %vm752, %vm753
      %v755 = vsel %vm754, %v747, %v751
      %v756 = vand.u32 2147483647, %v533
      %vm757 = vcmp.eq.f32.partialorder %v756, 8.507059e+37
      %v758 = vand.u32 %v533, 2147483648
      %v759 = vor.u32 1.1754944e-38, %v758
      %v760 = vsel %vm757, %v759, %v755
      %v761 = vmul.f32 1.0, %v760
      %v762 = vrcp.pop %v534
      %v763 = vmul.f32 %v534, %v762
      %v764 = vsub.f32 1.0, %v763
      %v765 = vmul.f32 %v762, %v764
      %v766 = vadd.f32 %v762, %v765
      %vm767 = vweird.f32 %v534
      %vm768 = vweird.f32 %v762
      %vm769 = vmor %vm767, %vm768
      %v770 = vsel %vm769, %v762, %v766
      %v771 = vand.u32 2147483647, %v534
      %vm772 = vcmp.eq.f32.partialorder %v771, 8.507059e+37
      %v773 = vand.u32 %v534, 2147483648
      %v774 = vor.u32 1.1754944e-38, %v773
      %v775 = vsel %vm772, %v774, %v770
      %v776 = vmul.f32 1.0, %v775
      %v777 = vrcp.pop %v535
      %v778 = vmul.f32 %v535, %v777
      %v779 = vsub.f32 1.0, %v778
      %v780 = vmul.f32 %v777, %v779
      %v781 = vadd.f32 %v777, %v780
      %vm782 = vweird.f32 %v535
      %vm783 = vweird.f32 %v777
      %vm784 = vmor %vm782, %vm783
      %v785 = vsel %vm784, %v777, %v781
      %v786 = vand.u32 2147483647, %v535
      %vm787 = vcmp.eq.f32.partialorder %v786, 8.507059e+37
      %v788 = vand.u32 %v535, 2147483648
      %v789 = vor.u32 1.1754944e-38, %v788
      %v790 = vsel %vm787, %v789, %v785
      %v791 = vmul.f32 1.0, %v790
      %v792 = vrcp.pop %v536
      %v793 = vmul.f32 %v536, %v792
      %v794 = vsub.f32 1.0, %v793
      %v795 = vmul.f32 %v792, %v794
      %v796 = vadd.f32 %v792, %v795
      %vm797 = vweird.f32 %v536
      %vm798 = vweird.f32 %v792
      %vm799 = vmor %vm797, %vm798
      %v800 = vsel %vm799, %v792, %v796
      %v801 = vand.u32 2147483647, %v536
      %vm802 = vcmp.eq.f32.partialorder %v801, 8.507059e+37
      %v803 = vand.u32 %v536, 2147483648
      %v804 = vor.u32 1.1754944e-38, %v803
      %v805 = vsel %vm802, %v804, %v800
      %v806 = vmul.f32 1.0, %v805
      %v807 = vrcp.pop %v537
      %v808 = vmul.f32 %v537, %v807
      %v809 = vsub.f32 1.0, %v808
      %v810 = vmul.f32 %v807, %v809
      %v811 = vadd.f32 %v807, %v810
      %vm812 = vweird.f32 %v537
      %vm813 = vweird.f32 %v807
      %vm814 = vmor %vm812, %vm813
      %v815 = vsel %vm814, %v807, %v811
      %v816 = vand.u32 2147483647, %v537
      %vm817 = vcmp.eq.f32.partialorder %v816, 8.507059e+37
      %v818 = vand.u32 %v537, 2147483648
      %v819 = vor.u32 1.1754944e-38, %v818
      %v820 = vsel %vm817, %v819, %v815
      %v821 = vmul.f32 1.0, %v820
      %v822 = vrcp.pop %v538
      %v823 = vmul.f32 %v538, %v822
      %v824 = vsub.f32 1.0, %v823
      %v825 = vmul.f32 %v822, %v824
      %v826 = vadd.f32 %v822, %v825
      %vm827 = vweird.f32 %v538
      %vm828 = vweird.f32 %v822
      %vm829 = vmor %vm827, %vm828
      %v830 = vsel %vm829, %v822, %v826
      %v831 = vand.u32 2147483647, %v538
      %vm832 = vcmp.eq.f32.partialorder %v831, 8.507059e+37
      %v833 = vand.u32 %v538, 2147483648
      %v834 = vor.u32 1.1754944e-38, %v833
      %v835 = vsel %vm832, %v834, %v830
      %v836 = vmul.f32 1.0, %v835
      %v837 = vrcp.pop %v539
      %v838 = vmul.f32 %v539, %v837
      %v839 = vsub.f32 1.0, %v838
      %v840 = vmul.f32 %v837, %v839
      %v841 = vadd.f32 %v837, %v840
      %vm842 = vweird.f32 %v539
      %vm843 = vweird.f32 %v837
      %vm844 = vmor %vm842, %vm843
      %v845 = vsel %vm844, %v837, %v841
      %v846 = vand.u32 2147483647, %v539
      %vm847 = vcmp.eq.f32.partialorder %v846, 8.507059e+37
      %v848 = vand.u32 %v539, 2147483648
      %v849 = vor.u32 1.1754944e-38, %v848
      %v850 = vsel %vm847, %v849, %v845
      %v851 = vmul.f32 1.0, %v850
      %v852 = vrcp.pop %v540
      %v853 = vmul.f32 %v540, %v852
      %v854 = vsub.f32 1.0, %v853
      %v855 = vmul.f32 %v852, %v854
      %v856 = vadd.f32 %v852, %v855
      %vm857 = vweird.f32 %v540
      %vm858 = vweird.f32 %v852
      %vm859 = vmor %vm857, %vm858
      %v860 = vsel %vm859, %v852, %v856
      %v861 = vand.u32 2147483647, %v540
      %vm862 = vcmp.eq.f32.partialorder %v861, 8.507059e+37
      %v863 = vand.u32 %v540, 2147483648
      %v864 = vor.u32 1.1754944e-38, %v863
      %v865 = vsel %vm862, %v864, %v860
      %v866 = vmul.f32 1.0, %v865
      %v867 = vrcp.pop %v541
      %v868 = vmul.f32 %v541, %v867
      %v869 = vsub.f32 1.0, %v868
      %v870 = vmul.f32 %v867, %v869
      %v871 = vadd.f32 %v867, %v870
      %vm872 = vweird.f32 %v541
      %vm873 = vweird.f32 %v867
      %vm874 = vmor %vm872, %vm873
      %v875 = vsel %vm874, %v867, %v871
      %v876 = vand.u32 2147483647, %v541
      %vm877 = vcmp.eq.f32.partialorder %v876, 8.507059e+37
      %v878 = vand.u32 %v541, 2147483648
      %v879 = vor.u32 1.1754944e-38, %v878
      %v880 = vsel %vm877, %v879, %v875
      %v881 = vmul.f32 1.0, %v880
      %v882 = vrcp.pop %v542
      %v883 = vmul.f32 %v542, %v882
      %v884 = vsub.f32 1.0, %v883
      %v885 = vmul.f32 %v882, %v884
      %v886 = vadd.f32 %v882, %v885
      %vm887 = vweird.f32 %v542
      %vm888 = vweird.f32 %v882
      %vm889 = vmor %vm887, %vm888
      %v890 = vsel %vm889, %v882, %v886
      %v891 = vand.u32 2147483647, %v542
      %vm892 = vcmp.eq.f32.partialorder %v891, 8.507059e+37
      %v893 = vand.u32 %v542, 2147483648
      %v894 = vor.u32 1.1754944e-38, %v893
      %v895 = vsel %vm892, %v894, %v890
      %v896 = vmul.f32 1.0, %v895
      %v897 = vrcp.pop %v543
      %v898 = vmul.f32 %v543, %v897
      %v899 = vsub.f32 1.0, %v898
      %v900 = vmul.f32 %v897, %v899
      %v901 = vadd.f32 %v897, %v900
      %vm902 = vweird.f32 %v543
      %vm903 = vweird.f32 %v897
      %vm904 = vmor %vm902, %vm903
      %v905 = vsel %vm904, %v897, %v901
      %v906 = vand.u32 2147483647, %v543
      %vm907 = vcmp.eq.f32.partialorder %v906, 8.507059e+37
      %v908 = vand.u32 %v543, 2147483648
      %v909 = vor.u32 1.1754944e-38, %v908
      %v910 = vsel %vm907, %v909, %v905
      %v911 = vmul.f32 1.0, %v910
      %v912 = vrcp.pop %v544
      %v913 = vmul.f32 %v544, %v912
      %v914 = vsub.f32 1.0, %v913
      %v915 = vmul.f32 %v912, %v914
      %v916 = vadd.f32 %v912, %v915
      %vm917 = vweird.f32 %v544
      %vm918 = vweird.f32 %v912
      %vm919 = vmor %vm917, %vm918
      %v920 = vsel %vm919, %v912, %v916
      %v921 = vand.u32 2147483647, %v544
      %vm922 = vcmp.eq.f32.partialorder %v921, 8.507059e+37
      %v923 = vand.u32 %v544, 2147483648
      %v924 = vor.u32 1.1754944e-38, %v923
      %v925 = vsel %vm922, %v924, %v920
      %v926 = vmul.f32 1.0, %v925
      %v927 = vrcp.pop %v545
      %v928 = vmul.f32 %v545, %v927
      %v929 = vsub.f32 1.0, %v928
      %v930 = vmul.f32 %v927, %v929
      %v931 = vadd.f32 %v927, %v930
      %vm932 = vweird.f32 %v545
      %vm933 = vweird.f32 %v927
      %vm934 = vmor %vm932, %vm933
      %v935 = vsel %vm934, %v927, %v931
      %v936 = vand.u32 2147483647, %v545
      %vm937 = vcmp.eq.f32.partialorder %v936, 8.507059e+37
      %v938 = vand.u32 %v545, 2147483648
      %v939 = vor.u32 1.1754944e-38, %v938
      %v940 = vsel %vm937, %v939, %v935
      %v941 = vmul.f32 1.0, %v940
      %v942 = vrcp.pop %v546
      %v943 = vmul.f32 %v546, %v942
      %v944 = vsub.f32 1.0, %v943
      %v945 = vmul.f32 %v942, %v944
      %v946 = vadd.f32 %v942, %v945
      %vm947 = vweird.f32 %v546
      %vm948 = vweird.f32 %v942
      %vm949 = vmor %vm947, %vm948
      %v950 = vsel %vm949, %v942, %v946
      %v951 = vand.u32 2147483647, %v546
      %vm952 = vcmp.eq.f32.partialorder %v951, 8.507059e+37
      %v953 = vand.u32 %v546, 2147483648
      %v954 = vor.u32 1.1754944e-38, %v953
      %v955 = vsel %vm952, %v954, %v950
      %v956 = vmul.f32 1.0, %v955
      %v957 = vrcp.pop %v547
      %v958 = vmul.f32 %v547, %v957
      %v959 = vsub.f32 1.0, %v958
      %v960 = vmul.f32 %v957, %v959
      %v961 = vadd.f32 %v957, %v960
      %vm962 = vweird.f32 %v547
      %vm963 = vweird.f32 %v957
      %vm964 = vmor %vm962, %vm963
      %v965 = vsel %vm964, %v957, %v961
      %v966 = vand.u32 2147483647, %v547
      %vm967 = vcmp.eq.f32.partialorder %v966, 8.507059e+37
      %v968 = vand.u32 %v547, 2147483648
      %v969 = vor.u32 1.1754944e-38, %v968
      %v970 = vsel %vm967, %v969, %v965
      %v971 = vmul.f32 1.0, %v970
      %v972 = vrcp.pop %v548
      %v973 = vmul.f32 %v548, %v972
      %v974 = vsub.f32 1.0, %v973
      %v975 = vmul.f32 %v972, %v974
      %v976 = vadd.f32 %v972, %v975
      %vm977 = vweird.f32 %v548
      %vm978 = vweird.f32 %v972
      %vm979 = vmor %vm977, %vm978
      %v980 = vsel %vm979, %v972, %v976
      %v981 = vand.u32 2147483647, %v548
      %vm982 = vcmp.eq.f32.partialorder %v981, 8.507059e+37
      %v983 = vand.u32 %v548, 2147483648
      %v984 = vor.u32 1.1754944e-38, %v983
      %v985 = vsel %vm982, %v984, %v980
      %v986 = vmul.f32 1.0, %v985
      %v987 = vrcp.pop %v549
      %v988 = vmul.f32 %v549, %v987
      %v989 = vsub.f32 1.0, %v988
      %v990 = vmul.f32 %v987, %v989
      %v991 = vadd.f32 %v987, %v990
      %vm992 = vweird.f32 %v549
      %vm993 = vweird.f32 %v987
      %vm994 = vmor %vm992, %vm993
      %v995 = vsel %vm994, %v987, %v991
      %v996 = vand.u32 2147483647, %v549
      %vm997 = vcmp.eq.f32.partialorder %v996, 8.507059e+37
      %v998 = vand.u32 %v549, 2147483648
      %v999 = vor.u32 1.1754944e-38, %v998
      %v1000 = vsel %vm997, %v999, %v995
      %v1001 = vmul.f32 1.0, %v1000
      %v1002 = vrcp.pop %v550
      %v1003 = vmul.f32 %v550, %v1002
      %v1004 = vsub.f32 1.0, %v1003
      %v1005 = vmul.f32 %v1002, %v1004
      %v1006 = vadd.f32 %v1002, %v1005
      %vm1007 = vweird.f32 %v550
      %vm1008 = vweird.f32 %v1002
      %vm1009 = vmor %vm1007, %vm1008
      %v1010 = vsel %vm1009, %v1002, %v1006
      %v1011 = vand.u32 2147483647, %v550
      %vm1012 = vcmp.eq.f32.partialorder %v1011, 8.507059e+37
      %v1013 = vand.u32 %v550, 2147483648
      %v1014 = vor.u32 1.1754944e-38, %v1013
      %v1015 = vsel %vm1012, %v1014, %v1010
      %v1016 = vmul.f32 1.0, %v1015
      %v1017 = vrcp.pop %v551
      %v1018 = vmul.f32 %v551, %v1017
      %v1019 = vsub.f32 1.0, %v1018
      %v1020 = vmul.f32 %v1017, %v1019
      %v1021 = vadd.f32 %v1017, %v1020
      %vm1022 = vweird.f32 %v551
      %vm1023 = vweird.f32 %v1017
      %vm1024 = vmor %vm1022, %vm1023
      %v1025 = vsel %vm1024, %v1017, %v1021
      %v1026 = vand.u32 2147483647, %v551
      %vm1027 = vcmp.eq.f32.partialorder %v1026, 8.507059e+37
      %v1028 = vand.u32 %v551, 2147483648
      %v1029 = vor.u32 1.1754944e-38, %v1028
      %v1030 = vsel %vm1027, %v1029, %v1025
      %v1031 = vmul.f32 1.0, %v1030
      %v1032 = vmul.f32 %v345, %v566
      %v1033 = vmul.f32 %v347, %v581
      %v1034 = vmul.f32 %v350, %v596
      %v1035 = vmul.f32 %v352, %v611
      %v1036 = vmul.f32 %v355, %v626
      %v1037 = vmul.f32 %v357, %v641
      %v1038 = vmul.f32 %v360, %v656
      %v1039 = vmul.f32 %v362, %v671
      %v1040 = vmul.f32 %v365, %v686
      %v1041 = vmul.f32 %v367, %v701
      %v1042 = vmul.f32 %v370, %v716
      %v1043 = vmul.f32 %v372, %v731
      %v1044 = vmul.f32 %v375, %v746
      %v1045 = vmul.f32 %v377, %v761
      %v1046 = vmul.f32 %v380, %v776
      %v1047 = vmul.f32 %v382, %v791
      %v1048 = vmul.f32 %v385, %v806
      %v1049 = vmul.f32 %v387, %v821
      %v1050 = vmul.f32 %v390, %v836
      %v1051 = vmul.f32 %v392, %v851
      %v1052 = vmul.f32 %v395, %v866
      %v1053 = vmul.f32 %v397, %v881
      %v1054 = vmul.f32 %v400, %v896
      %v1055 = vmul.f32 %v402, %v911
      %v1056 = vmul.f32 %v405, %v926
      %v1057 = vmul.f32 %v407, %v941
      %v1058 = vmul.f32 %v410, %v956
      %v1059 = vmul.f32 %v412, %v971
      %v1060 = vmul.f32 %v415, %v986
      %v1061 = vmul.f32 %v417, %v1001
      %v1062 = vmul.f32 %v420, %v1016
      %v1063 = vmul.f32 %v422, %v1031
      %v1064 = vpack.c.bf16 %v1033, %v1032
      %v1065 = vpack.c.bf16 %v1035, %v1034
      %v1066 = vpack.c.bf16 %v1037, %v1036
      %v1067 = vpack.c.bf16 %v1039, %v1038
      %v1068 = vpack.c.bf16 %v1041, %v1040
      %v1069 = vpack.c.bf16 %v1043, %v1042
      %v1070 = vpack.c.bf16 %v1045, %v1044
      %v1071 = vpack.c.bf16 %v1047, %v1046
      %v1072 = vpack.c.bf16 %v1049, %v1048
      %v1073 = vpack.c.bf16 %v1051, %v1050
      %v1074 = vpack.c.bf16 %v1053, %v1052
      %v1075 = vpack.c.bf16 %v1055, %v1054
      %v1076 = vpack.c.bf16 %v1057, %v1056
      %v1077 = vpack.c.bf16 %v1059, %v1058
      %v1078 = vpack.c.bf16 %v1061, %v1060
      %v1079 = vpack.c.bf16 %v1063, %v1062
      %v1080 = vld [vmem:[%s3] sm:$0xf]
      %v1081 = vld [vmem:[%s3 + $0x4] sm:$0xf]
      %v1082 = vld [vmem:[%s3 + $0x8] sm:$0xf]
      %v1083 = vld [vmem:[%s3 + $0xc] sm:$0xf]
      %v1088 = vunpack.c.l.b16 %v1080
      %v1089 = vunpack.c.l.b16 %v1081
      %v1090 = vunpack.c.l.b16 %v1082
      %v1091 = vunpack.c.l.b16 %v1083
      %v1092 = vpack.c.b16 %v1089, %v1088
      %v1093 = vpack.c.b16 %v1091, %v1090
      %vm1096 = vcmask 261120
      %v1098 = vsel %vm1096, %v1064, 0
      %v1101 = vsel %vm1096, %v1065, 0
      %v1104 = vsel %vm1096, %v1066, 0
      %v1107 = vsel %vm1096, %v1067, 0
      %v1110 = vsel %vm1096, %v1068, 0
      %v1113 = vsel %vm1096, %v1069, 0
      %v1116 = vsel %vm1096, %v1070, 0
      %v1119 = vsel %vm1096, %v1071, 0
      %v1122 = vsel %vm1096, %v1072, 0
      %v1125 = vsel %vm1096, %v1073, 0
      %v1128 = vsel %vm1096, %v1074, 0
      %v1131 = vsel %vm1096, %v1075, 0
      %v1134 = vsel %vm1096, %v1076, 0
      %v1137 = vsel %vm1096, %v1077, 0
      %v1140 = vsel %vm1096, %v1078, 0
      %v1143 = vsel %vm1096, %v1079, 0
      %1145 = vmatpush.bf16.msra.mxu0 0
      %1146 = vmatpush.bf16.msra.mxu0 0
      %1147 = vmatpush.bf16.msra.mxu0 0
      %1148 = vmatpush.bf16.msra.mxu0 0
      %1149 = vmatpush.bf16.msra.mxu0 0
      %1150 = vmatpush.bf16.msra.mxu0 0
      %1151 = vmatpush.bf16.msra.mxu0 %v1093
      %1152 = vmatpush.bf16.msra.mxu0 %v1092
      %1153 = vmatmul.bf16.gmra.mxu0 %v1098
      %v1154 = vpop.f32.mrf.mxu0
      %v1155 = vadd.f32 0.0, %v1154
      %v1156 = vpop.f32.mrf.mxu0
      %v1157 = vadd.f32 0.0, %v1156
      %1158 = vmatmul.bf16.gmra.mxu0 %v1101
      %v1159 = vpop.f32.mrf.mxu0
      %v1160 = vadd.f32 0.0, %v1159
      %v1161 = vpop.f32.mrf.mxu0
      %v1162 = vadd.f32 0.0, %v1161
      %1163 = vmatmul.bf16.gmra.mxu0 %v1104
      %v1164 = vpop.f32.mrf.mxu0
      %v1165 = vadd.f32 0.0, %v1164
      %v1166 = vpop.f32.mrf.mxu0
      %v1167 = vadd.f32 0.0, %v1166
      %1168 = vmatmul.bf16.gmra.mxu0 %v1107
      %v1169 = vpop.f32.mrf.mxu0
      %v1170 = vadd.f32 0.0, %v1169
      %v1171 = vpop.f32.mrf.mxu0
      %v1172 = vadd.f32 0.0, %v1171
      %1173 = vmatmul.bf16.gmra.mxu0 %v1110
      %v1174 = vpop.f32.mrf.mxu0
      %v1175 = vadd.f32 0.0, %v1174
      %v1176 = vpop.f32.mrf.mxu0
      %v1177 = vadd.f32 0.0, %v1176
      %1178 = vmatmul.bf16.gmra.mxu0 %v1113
      %v1179 = vpop.f32.mrf.mxu0
      %v1180 = vadd.f32 0.0, %v1179
      %v1181 = vpop.f32.mrf.mxu0
      %v1182 = vadd.f32 0.0, %v1181
      %1183 = vmatmul.bf16.gmra.mxu0 %v1116
      %v1184 = vpop.f32.mrf.mxu0
      %v1185 = vadd.f32 0.0, %v1184
      %v1186 = vpop.f32.mrf.mxu0
      %v1187 = vadd.f32 0.0, %v1186
      %1188 = vmatmul.bf16.gmra.mxu0 %v1119
      %v1189 = vpop.f32.mrf.mxu0
      %v1190 = vadd.f32 0.0, %v1189
      %v1191 = vpop.f32.mrf.mxu0
      %v1192 = vadd.f32 0.0, %v1191
      %1193 = vmatmul.bf16.gmra.mxu0 %v1122
      %v1194 = vpop.f32.mrf.mxu0
      %v1195 = vadd.f32 0.0, %v1194
      %v1196 = vpop.f32.mrf.mxu0
      %v1197 = vadd.f32 0.0, %v1196
      %1198 = vmatmul.bf16.gmra.mxu0 %v1125
      %v1199 = vpop.f32.mrf.mxu0
      %v1200 = vadd.f32 0.0, %v1199
      %v1201 = vpop.f32.mrf.mxu0
      %v1202 = vadd.f32 0.0, %v1201
      %1203 = vmatmul.bf16.gmra.mxu0 %v1128
      %v1204 = vpop.f32.mrf.mxu0
      %v1205 = vadd.f32 0.0, %v1204
      %v1206 = vpop.f32.mrf.mxu0
      %v1207 = vadd.f32 0.0, %v1206
      %1208 = vmatmul.bf16.gmra.mxu0 %v1131
      %v1209 = vpop.f32.mrf.mxu0
      %v1210 = vadd.f32 0.0, %v1209
      %v1211 = vpop.f32.mrf.mxu0
      %v1212 = vadd.f32 0.0, %v1211
      %1213 = vmatmul.bf16.gmra.mxu0 %v1134
      %v1214 = vpop.f32.mrf.mxu0
      %v1215 = vadd.f32 0.0, %v1214
      %v1216 = vpop.f32.mrf.mxu0
      %v1217 = vadd.f32 0.0, %v1216
      %1218 = vmatmul.bf16.gmra.mxu0 %v1137
      %v1219 = vpop.f32.mrf.mxu0
      %v1220 = vadd.f32 0.0, %v1219
      %v1221 = vpop.f32.mrf.mxu0
      %v1222 = vadd.f32 0.0, %v1221
      %1223 = vmatmul.bf16.gmra.mxu0 %v1140
      %v1224 = vpop.f32.mrf.mxu0
      %v1225 = vadd.f32 0.0, %v1224
      %v1226 = vpop.f32.mrf.mxu0
      %v1227 = vadd.f32 0.0, %v1226
      %1228 = vmatmul.bf16.gmra.mxu0 %v1143
      %v1229 = vpop.f32.mrf.mxu0
      %v1230 = vadd.f32 0.0, %v1229
      %v1231 = vpop.f32.mrf.mxu0
      %v1232 = vadd.f32 0.0, %v1231
      %1233 = vdwg.mxu0
      %v1234 = vadd.f32 %v1032, %v1155
      %v1235 = vadd.f32 %v1033, %v1157
      %v1236 = vadd.f32 %v1034, %v1160
      %v1237 = vadd.f32 %v1035, %v1162
      %v1238 = vadd.f32 %v1036, %v1165
      %v1239 = vadd.f32 %v1037, %v1167
      %v1240 = vadd.f32 %v1038, %v1170
      %v1241 = vadd.f32 %v1039, %v1172
      %v1242 = vadd.f32 %v1040, %v1175
      %v1243 = vadd.f32 %v1041, %v1177
      %v1244 = vadd.f32 %v1042, %v1180
      %v1245 = vadd.f32 %v1043, %v1182
      %v1246 = vadd.f32 %v1044, %v1185
      %v1247 = vadd.f32 %v1045, %v1187
      %v1248 = vadd.f32 %v1046, %v1190
      %v1249 = vadd.f32 %v1047, %v1192
      %v1250 = vadd.f32 %v1048, %v1195
      %v1251 = vadd.f32 %v1049, %v1197
      %v1252 = vadd.f32 %v1050, %v1200
      %v1253 = vadd.f32 %v1051, %v1202
      %v1254 = vadd.f32 %v1052, %v1205
      %v1255 = vadd.f32 %v1053, %v1207
      %v1256 = vadd.f32 %v1054, %v1210
      %v1257 = vadd.f32 %v1055, %v1212
      %v1258 = vadd.f32 %v1056, %v1215
      %v1259 = vadd.f32 %v1057, %v1217
      %v1260 = vadd.f32 %v1058, %v1220
      %v1261 = vadd.f32 %v1059, %v1222
      %v1262 = vadd.f32 %v1060, %v1225
      %v1263 = vadd.f32 %v1061, %v1227
      %v1264 = vadd.f32 %v1062, %v1230
      %v1265 = vadd.f32 %v1063, %v1232
      %v1266 = vld [vmem:[%s4] sm:$0x1]
      %v1268 = vperm.slane %v1266, 0
      %v1270 = vadd.f32 %v1234, %v1268
      %v1271 = vadd.f32 %v1235, %v1268
      %v1272 = vadd.f32 %v1236, %v1268
      %v1273 = vadd.f32 %v1237, %v1268
      %v1274 = vadd.f32 %v1238, %v1268
      %v1275 = vadd.f32 %v1239, %v1268
      %v1276 = vadd.f32 %v1240, %v1268
      %v1277 = vadd.f32 %v1241, %v1268
      %v1278 = vadd.f32 %v1242, %v1268
      %v1279 = vadd.f32 %v1243, %v1268
      %v1280 = vadd.f32 %v1244, %v1268
      %v1281 = vadd.f32 %v1245, %v1268
      %v1282 = vadd.f32 %v1246, %v1268
      %v1283 = vadd.f32 %v1247, %v1268
      %v1284 = vadd.f32 %v1248, %v1268
      %v1285 = vadd.f32 %v1249, %v1268
      %v1286 = vadd.f32 %v1250, %v1268
      %v1287 = vadd.f32 %v1251, %v1268
      %v1288 = vadd.f32 %v1252, %v1268
      %v1289 = vadd.f32 %v1253, %v1268
      %v1290 = vadd.f32 %v1254, %v1268
      %v1291 = vadd.f32 %v1255, %v1268
      %v1292 = vadd.f32 %v1256, %v1268
      %v1293 = vadd.f32 %v1257, %v1268
      %v1294 = vadd.f32 %v1258, %v1268
      %v1295 = vadd.f32 %v1259, %v1268
      %v1296 = vadd.f32 %v1260, %v1268
      %v1297 = vadd.f32 %v1261, %v1268
      %v1298 = vadd.f32 %v1262, %v1268
      %v1299 = vadd.f32 %v1263, %v1268
      %v1300 = vadd.f32 %v1264, %v1268
      %v1301 = vadd.f32 %v1265, %v1268
      %1302 = vst.msk [vmem:[%s226] sm:$0xff] %vm1096, %v1270
      %1303 = vst.msk [vmem:[%s226 + $0x8] sm:$0xff] %vm1096, %v1271
      %1304 = vst.msk [vmem:[%s226 + $0x10] sm:$0xff] %vm1096, %v1272
      %1305 = vst.msk [vmem:[%s226 + $0x18] sm:$0xff] %vm1096, %v1273
      %1306 = vst.msk [vmem:[%s226 + $0x20] sm:$0xff] %vm1096, %v1274
      %1307 = vst.msk [vmem:[%s226 + $0x28] sm:$0xff] %vm1096, %v1275
      %1308 = vst.msk [vmem:[%s226 + $0x30] sm:$0xff] %vm1096, %v1276
      %1309 = vst.msk [vmem:[%s226 + $0x38] sm:$0xff] %vm1096, %v1277
      %1310 = vst.msk [vmem:[%s226 + $0x40] sm:$0xff] %vm1096, %v1278
      %1311 = vst.msk [vmem:[%s226 + $0x48] sm:$0xff] %vm1096, %v1279
      %1312 = vst.msk [vmem:[%s226 + $0x50] sm:$0xff] %vm1096, %v1280
      %1313 = vst.msk [vmem:[%s226 + $0x58] sm:$0xff] %vm1096, %v1281
      %1314 = vst.msk [vmem:[%s226 + $0x60] sm:$0xff] %vm1096, %v1282
      %1315 = vst.msk [vmem:[%s226 + $0x68] sm:$0xff] %vm1096, %v1283
      %1316 = vst.msk [vmem:[%s226 + $0x70] sm:$0xff] %vm1096, %v1284
      %1317 = vst.msk [vmem:[%s226 + $0x78] sm:$0xff] %vm1096, %v1285
      %1318 = vst.msk [vmem:[%s226 + $0x80] sm:$0xff] %vm1096, %v1286
      %1319 = vst.msk [vmem:[%s226 + $0x88] sm:$0xff] %vm1096, %v1287
      %1320 = vst.msk [vmem:[%s226 + $0x90] sm:$0xff] %vm1096, %v1288
      %1321 = vst.msk [vmem:[%s226 + $0x98] sm:$0xff] %vm1096, %v1289
      %1322 = vst.msk [vmem:[%s226 + $0xa0] sm:$0xff] %vm1096, %v1290
      %1323 = vst.msk [vmem:[%s226 + $0xa8] sm:$0xff] %vm1096, %v1291
      %1324 = vst.msk [vmem:[%s226 + $0xb0] sm:$0xff] %vm1096, %v1292
      %1325 = vst.msk [vmem:[%s226 + $0xb8] sm:$0xff] %vm1096, %v1293
      %1326 = vst.msk [vmem:[%s226 + $0xc0] sm:$0xff] %vm1096, %v1294
      %1327 = vst.msk [vmem:[%s226 + $0xc8] sm:$0xff] %vm1096, %v1295
      %1328 = vst.msk [vmem:[%s226 + $0xd0] sm:$0xff] %vm1096, %v1296
      %1329 = vst.msk [vmem:[%s226 + $0xd8] sm:$0xff] %vm1096, %v1297
      %1330 = vst.msk [vmem:[%s226 + $0xe0] sm:$0xff] %vm1096, %v1298
      %1331 = vst.msk [vmem:[%s226 + $0xe8] sm:$0xff] %vm1096, %v1299
      %1332 = vst.msk [vmem:[%s226 + $0xf0] sm:$0xff] %vm1096, %v1300
      %1333 = vst.msk [vmem:[%s226 + $0xf8] sm:$0xff] %vm1096, %v1301
      %s1334 = smul.u32 32, %s16
      %p1335 = scmp.lt.s32.totalorder %s1334, 63
      %s1336 = scalar_select %p1335, %s1334, 63
      %s1337 = smul.addr %s1336, 8
      %s1338 = scalar_lea.vmem %s5, %s1337
      // Predicated region
      $region41: #{tpu_custom_call.1} parent=39 // pred_check
        %p1339 = pneg %p144
      $region42: #{tpu_custom_call.1} parent=39 // pred_check_branch
        %1341 = sbr.rel (%p1339) target = $region44
      $region43: #{tpu_custom_call.1} parent=39 // pred_region
        %s1342 = smul.u32 32, %s16
      $region44: #{tpu_custom_call.1} parent=39 // pred_fallthru
        _
    $region40: #{tpu_custom_call.1} parent=5 // pred_fallthru
      _
    %p1343 = scmp.le.s32.totalorder 2, %s11
    // Predicated region
    $region45: #{tpu_custom_call.1} parent=5 // pred_check
      %p1344 = pneg %p1343
    $region46: #{tpu_custom_call.1} parent=5 // pred_check_branch
      %1346 = sbr.rel (%p1344) target = $region48
    $region47: #{tpu_custom_call.1} parent=5 // pred_region
      %s1347 = ssub.s32 %s11, 2
      // Predicated region
      $region49: #{tpu_custom_call.1} parent=47 // pred_check
        %p1348 = pneg %p150
      $region50: #{tpu_custom_call.1} parent=47 // pred_check_branch
        %1350 = sbr.rel (%p1348) target = $region52
      $region51: #{tpu_custom_call.1} parent=47 // pred_region
        %s1351 = smul.u32 32, %s17
        %p1352 = scmp.lt.s32.totalorder %s1351, 63
        %s1353 = scalar_select %p1352, %s1351, 63
        %s1354 = smul.addr %s1353, 8
        %s1355 = scalar_lea.vmem %s5, %s1354
      $region52: #{tpu_custom_call.1} parent=47 // pred_fallthru
        _
    $region48: #{tpu_custom_call.1} parent=5 // pred_fallthru
      _
  $region6: #{tpu_custom_call.1} parent=0 // loop_footer
    %s15 = sadd.s32 1, %s11
  $region7: #{tpu_custom_call.1} parent=0 // loop_footer_branch
    %10 = sbr.rel target = $region3
  $region8: #{tpu_custom_call.1} parent=0 // loop_exit
    _

</llo_original>
